<compile_context>
chip_gen: v7x
topology: tpu7x:2x2x1
jax: 0.10.0
libtpu: 0.0.40
codegen_flags: <defaults>
</compile_context>

<pallas_src>
import functools

import jax
import jax.numpy as jnp
from jax import lax
from jax.experimental import pallas as pl
from jax.experimental.pallas import tpu as pltpu


# --------------------------------------------------------------------------
# Pallas kernels
# --------------------------------------------------------------------------

def frontend_kernel(x_ref, gw_ref, gb_ref, wb_ref, wa1_ref, wa2_ref, spk_ref, o_ref):
    """Per-batch: GroupNorm(1,N) -> bottleneck 1x1 conv -> [concat spk_emb; av 1x1 conv].

    The concat + av_conv is fused as  Wa[:, :C] @ bottleneck + Wa[:, C:] @ spk.
    Single-pass mean/var (sum & sum-of-squares).
    """
    x = x_ref[0]                                       # [N, L]
    n = float(x.shape[0] * x.shape[1])
    s1 = jnp.sum(x)
    s2 = jnp.sum(x * x)
    mean = s1 / n
    var = jnp.maximum(s2 / n - mean * mean, 0.0)
    xn = (x - mean) * lax.rsqrt(var + 1e-8)
    xn = xn * gw_ref[...] + gb_ref[...]                # gamma/beta: [N, 1] bcast over L
    bott = jnp.dot(wb_ref[...], xn, preferred_element_type=jnp.float32)              # [C, L]
    spk_term = jnp.dot(wa2_ref[...], spk_ref[0], preferred_element_type=jnp.float32)  # [C, 1]
    o_ref[0] = jnp.dot(wa1_ref[...], bott, preferred_element_type=jnp.float32) + spk_term


def bilstm_linear_kernel(x_ref, wih_ref, whh_ref, bf_ref, bb_ref,
                         wlf_ref, wlb_ref, bl_ref, o_ref,
                         xpf_scr, xpb_scr, hf_scr, hb_scr, *, T, MT, H):
    """Bidirectional single-layer LSTM (PyTorch gate order i,f,g,o) + Linear(2H -> C).

    x_ref:  [1, T*MT, Cin]  rows ordered time-major (row = t*MT + m) within this M tile.
    o_ref:  [1, T*MT, C].
    Forward & backward directions run stacked on the row axis in ONE fori_loop;
    the per-step recurrent matmul is a single [2*MT, H] x [H, 8H] MXU op.
    """
    G = 4 * H

    # ---- Hoisted input projection for BOTH directions: one big MXU matmul ----
    xp = jnp.dot(x_ref[0], wih_ref[...], preferred_element_type=jnp.float32)   # [T*MT, 8H]
    xpf_scr[...] = xp[:, :G] + bf_ref[...]             # forward gates pre-activation (x part)
    xpb_scr[...] = xp[:, G:] + bb_ref[...]             # backward gates pre-activation (x part)

    # ---- Single serial loop over T; fwd rows [:MT], bwd rows [MT:] ----
    def step(t, carry):
        h, c = carry                                                    # [2*MT, H]
        rt = T - 1 - t
        off_f = pl.multiple_of(t * MT, MT)
        off_b = pl.multiple_of(rt * MT, MT)
        full = jnp.dot(h, whh_ref[...], preferred_element_type=jnp.float32)   # [2*MT, 8H]
        pre_f = full[:MT, :G] + xpf_scr[pl.ds(off_f, MT), :]
        pre_b = full[MT:, G:] + xpb_scr[pl.ds(off_b, MT), :]
        pre = jnp.concatenate([pre_f, pre_b], axis=0)                   # [2*MT, 4H]
        i_g = jax.nn.sigmoid(pre[:, 0:H])
        f_g = jax.nn.sigmoid(pre[:, H:2 * H])
        g_g = jnp.tanh(pre[:, 2 * H:3 * H])
        o_g = jax.nn.sigmoid(pre[:, 3 * H:4 * H])
        c_new = f_g * c + i_g * g_g
        h_new = o_g * jnp.tanh(c_new)
        hf_scr[pl.ds(off_f, MT), :] = h_new[:MT]
        hb_scr[pl.ds(off_b, MT), :] = h_new[MT:]
        return (h_new, c_new)

    z = jnp.zeros((2 * MT, H), jnp.float32)
    lax.fori_loop(0, T, step, (z, z))

    # ---- Fused output Linear(2H -> C): one matmul per direction over all rows ----
    o_ref[0] = (jnp.dot(hf_scr[...], wlf_ref[...], preferred_element_type=jnp.float32)
                + jnp.dot(hb_scr[...], wlb_ref[...], preferred_element_type=jnp.float32)
                + bl_ref[...])


def norm_add_kernel(y_ref, res_ref, gw_ref, gb_ref, o_ref):
    """Per-batch GroupNorm(1, C) over [C, K, S] followed by residual add (single-pass stats)."""
    y = y_ref[0]                                       # [C, K, S]
    n = float(y.shape[0] * y.shape[1] * y.shape[2])
    s1 = jnp.sum(y)
    s2 = jnp.sum(y * y)
    mean = s1 / n
    var = jnp.maximum(s2 / n - mean * mean, 0.0)
    yn = (y - mean) * lax.rsqrt(var + 1e-8)
    o_ref[0] = yn * gw_ref[...] + gb_ref[...] + res_ref[0]


def prelu_kernel(x_ref, a_ref, o_ref):
    a = a_ref[0, 0]
    x = x_ref[...]
    o_ref[...] = jnp.where(x >= 0, x, a * x)


# --------------------------------------------------------------------------
# Kernel wrappers
# --------------------------------------------------------------------------

def _round_up(x, m):
    return ((x + m - 1) // m) * m


def frontend(x, spk_emb, gn_w, gn_b, Wb, Wa1, Wa2):
    B, N, L = x.shape
    C = Wb.shape[0]
    E = Wa2.shape[1]
    spk3 = spk_emb.reshape(B, E, 1)
    gw = gn_w.reshape(N, 1)
    gb = gn_b.reshape(N, 1)
    return pl.pallas_call(
        frontend_kernel,
        out_shape=jax.ShapeDtypeStruct((B, C, L), jnp.float32),
        grid=(B,),
        in_specs=[
            pl.BlockSpec((1, N, L), lambda b: (b, 0, 0)),
            pl.BlockSpec((N, 1), lambda b: (0, 0)),
            pl.BlockSpec((N, 1), lambda b: (0, 0)),
            pl.BlockSpec((C, N), lambda b: (0, 0)),
            pl.BlockSpec((C, C), lambda b: (0, 0)),
            pl.BlockSpec((C, E), lambda b: (0, 0)),
            pl.BlockSpec((1, E, 1), lambda b: (b, 0, 0)),
        ],
        out_specs=pl.BlockSpec((1, C, L), lambda b: (b, 0, 0)),
        compiler_params=pltpu.CompilerParams(dimension_semantics=("parallel",)),
    )(x, gw, gb, Wb, Wa1, Wa2, spk3)


def bilstm_linear(x_tmc, p, mt_max=512):
    """x_tmc: [T, M, Cin] time-major. Returns [T, M, C]."""
    T, M, Cin = x_tmc.shape
    H = p["H"]
    C = p["wl_f"].shape[-1]
    G = 4 * H

    MT = min(mt_max, _round_up(M, 8))          # M tile (multiple of 8 sublanes)
    nt = -(-M // MT)
    Mp = nt * MT
    if Mp != M:
        x_tmc = jnp.pad(x_tmc, ((0, 0), (0, Mp - M), (0, 0)))
    # [T, Mp, Cin] -> [nt, T*MT, Cin], rows within a tile ordered time-major.
    xt = x_tmc.reshape(T, nt, MT, Cin).transpose(1, 0, 2, 3).reshape(nt, T * MT, Cin)

    kernel = functools.partial(bilstm_linear_kernel, T=T, MT=MT, H=H)
    out = pl.pallas_call(
        kernel,
        out_shape=jax.ShapeDtypeStruct((nt, T * MT, C), jnp.float32),
        grid=(nt,),
        in_specs=[
            pl.BlockSpec((1, T * MT, Cin), lambda i: (i, 0, 0)),
            # weights: constant index maps -> stay resident across M tiles
            pl.BlockSpec((Cin, 2 * G), lambda i: (0, 0)),
            pl.BlockSpec((H, 2 * G), lambda i: (0, 0)),
            pl.BlockSpec((1, G), lambda i: (0, 0)),
            pl.BlockSpec((1, G), lambda i: (0, 0)),
            pl.BlockSpec((H, C), lambda i: (0, 0)),
            pl.BlockSpec((H, C), lambda i: (0, 0)),
            pl.BlockSpec((1, C), lambda i: (0, 0)),
        ],
        out_specs=pl.BlockSpec((1, T * MT, C), lambda i: (i, 0, 0)),
        scratch_shapes=[pltpu.VMEM((T * MT, G), jnp.float32),   # hoisted x-proj (fwd)
                        pltpu.VMEM((T * MT, G), jnp.float32),   # hoisted x-proj (bwd)
                        pltpu.VMEM((T * MT, H), jnp.float32),   # fwd hidden states
                        pltpu.VMEM((T * MT, H), jnp.float32)],  # bwd hidden states
        compiler_params=pltpu.CompilerParams(dimension_semantics=("parallel",)),
    )(xt, p["wih"], p["whh"], p["b_f"], p["b_b"], p["wl_f"], p["wl_b"], p["bl"])

    out = out.reshape(nt, T, MT, C).transpose(1, 0, 2, 3).reshape(T, Mp, C)
    if Mp != M:
        out = out[:, :M]
    return out


def norm_add(y, res, gn_w, gn_b):
    B, C, K, S = y.shape
    gw = gn_w.reshape(C, 1, 1)
    gb = gn_b.reshape(C, 1, 1)
    return pl.pallas_call(
        norm_add_kernel,
        out_shape=jax.ShapeDtypeStruct((B, C, K, S), jnp.float32),
        grid=(B,),
        in_specs=[
            pl.BlockSpec((1, C, K, S), lambda b: (b, 0, 0, 0)),
            pl.BlockSpec((1, C, K, S), lambda b: (b, 0, 0, 0)),
            pl.BlockSpec((C, 1, 1), lambda b: (0, 0, 0)),
            pl.BlockSpec((C, 1, 1), lambda b: (0, 0, 0)),
        ],
        out_specs=pl.BlockSpec((1, C, K, S), lambda b: (b, 0, 0, 0)),
        compiler_params=pltpu.CompilerParams(dimension_semantics=("parallel",)),
    )(y, res, gw, gb)


def prelu(x, alpha):
    B, C, L = x.shape
    a = jnp.asarray(alpha, jnp.float32).reshape(1, 1)
    return pl.pallas_call(
        prelu_kernel,
        out_shape=jax.ShapeDtypeStruct(x.shape, x.dtype),
        grid=(B,),
        in_specs=[pl.BlockSpec((1, C, L), lambda b: (b, 0, 0)),
                  pl.BlockSpec(memory_space=pltpu.MemorySpace.SMEM)],
        out_specs=pl.BlockSpec((1, C, L), lambda b: (b, 0, 0)),
        compiler_params=pltpu.CompilerParams(dimension_semantics=("parallel",)),
    )(x, a)


# --------------------------------------------------------------------------
# Glue: segmentation / overlap-add / block orchestration (plain JAX)
# TODO(synk): the transpose glue between kernels still round-trips HBM; folding
# the permutes into BlockSpec index_maps (and norm_add into the bilstm epilogue)
# is a further bandwidth win not done here.
# --------------------------------------------------------------------------

def segmentation(x, K):
    B, N, L = x.shape
    P = K // 2
    gap = K - (P + L % K) % K
    if gap > 0:
        x = jnp.concatenate([x, jnp.zeros((B, N, gap), x.dtype)], axis=2)
    pad = jnp.zeros((B, N, P), x.dtype)
    x = jnp.concatenate([pad, x, pad], axis=2)
    input1 = x[:, :, :-P].reshape(B, N, -1, K)
    input2 = x[:, :, P:].reshape(B, N, -1, K)
    x = jnp.concatenate([input1, input2], axis=3).reshape(B, N, -1, K)
    x = jnp.swapaxes(x, 2, 3)
    return x, gap


def over_add(x, gap):
    B, N, K, S = x.shape
    P = K // 2
    x = jnp.swapaxes(x, 2, 3).reshape(B, N, -1, K * 2)
    input1 = x[:, :, :, :K].reshape(B, N, -1)[:, :, P:]
    input2 = x[:, :, :, K:].reshape(B, N, -1)[:, :, :-P]
    x = input1 + input2
    if gap > 0:
        x = x[:, :, :-gap]
    return x


def dual_rnn_block(x, p):
    B, C, K, S = x.shape
    # intra-chunk BiLSTM (sequence axis = K, batch of B*S sequences)
    xi = jnp.transpose(x, (2, 0, 3, 1)).reshape(K, B * S, C)            # [K, B*S, C] time-major
    yi = bilstm_linear(xi, p["intra"])                                   # [K, B*S, C]
    intra = jnp.transpose(yi.reshape(K, B, S, C), (1, 3, 0, 2))          # [B, C, K, S]
    intra = norm_add(intra, x, p["intra_gn_w"], p["intra_gn_b"])
    # inter-chunk BiLSTM (sequence axis = S, batch of B*K sequences)
    xj = jnp.transpose(intra, (3, 0, 2, 1)).reshape(S, B * K, C)         # [S, B*K, C] time-major
    yj = bilstm_linear(xj, p["inter"])                                   # [S, B*K, C]
    inter = jnp.transpose(yj.reshape(S, B, K, C), (1, 3, 2, 0))          # [B, C, K, S]
    return norm_add(inter, intra, p["inter_gn_w"], p["inter_gn_b"])


def dual_path_rnn_forward(x, spk_emb, params, chunk_size):
    y = frontend(x, spk_emb, params["gn_w"], params["gn_b"],
                 params["Wb"], params["Wa1"], params["Wa2"])
    seg, gap = segmentation(y, chunk_size)
    for bp in params["blocks"]:
        seg = dual_rnn_block(seg, bp)
    y = over_add(seg, gap)
    return prelu(y, params["prelu_alpha"])


# --------------------------------------------------------------------------
# Deterministic parameter initialization (shapes follow the PyTorch __init__)
# --------------------------------------------------------------------------

def make_lstm_params(key, Cin, H, Cout):
    kf, kb, kw, kbias = jax.random.split(key, 4)

    def one_dir(k):
        k1, k2, k3, k4 = jax.random.split(k, 4)
        w_ih = 0.1 * jax.random.normal(k1, (4 * H, Cin))     # PyTorch weight_ih_l0 (i,f,g,o rows)
        w_hh = 0.1 * jax.random.normal(k2, (4 * H, H))       # PyTorch weight_hh_l0
        b_ih = 0.1 * jax.random.normal(k3, (4 * H,))
        b_hh = 0.1 * jax.random.normal(k4, (4 * H,))
        # transpose for right-multiplication; gate order i,f,g,o preserved in columns
        return w_ih.T, w_hh.T, (b_ih + b_hh).reshape(1, 4 * H)

    wih_f, whh_f, b_f = one_dir(kf)
    wih_b, whh_b, b_b = one_dir(kb)
    wl = 0.1 * jax.random.normal(kw, (Cout, 2 * H))          # nn.Linear(2H, Cout)
    bl = 0.1 * jax.random.normal(kbias, (Cout,))
    return dict(
        wih=jnp.concatenate([wih_f, wih_b], axis=1),         # [Cin, 8H]  (fwd | bwd)
        whh=jnp.concatenate([whh_f, whh_b], axis=1),         # [H,   8H]
        b_f=b_f, b_b=b_b,                                    # [1, 4H] each
        wl_f=jnp.transpose(wl[:, :H]),                       # [H, Cout]
        wl_b=jnp.transpose(wl[:, H:]),                       # [H, Cout]
        bl=bl.reshape(1, Cout),
        H=H,
    )


def make_block_params(key, C, H):
    k1, k2, k3, k4, k5, k6 = jax.random.split(key, 6)
    return dict(
        intra=make_lstm_params(k1, C, H, C),
        inter=make_lstm_params(k2, C, H, C),
        intra_gn_w=1.0 + 0.1 * jax.random.normal(k3, (C,)),
        intra_gn_b=0.1 * jax.random.normal(k4, (C,)),
        inter_gn_w=1.0 + 0.1 * jax.random.normal(k5, (C,)),
        inter_gn_b=0.1 * jax.random.normal(k6, (C,)),
    )


def init_params(key, N, C, H, E, layers):
    keys = jax.random.split(key, 4 + layers)
    Wa = 0.2 * jax.random.normal(keys[3], (C, C + E))        # av_conv weight [C, C+E, 1]
    params = dict(
        gn_w=1.0 + 0.1 * jax.random.normal(keys[0], (N,)),
        gn_b=0.1 * jax.random.normal(keys[1], (N,)),
        Wb=0.2 * jax.random.normal(keys[2], (C, N)),         # bottleneck conv [C, N, 1]
        Wa1=Wa[:, :C],
        Wa2=Wa[:, C:],
        prelu_alpha=0.25,                                    # nn.PReLU() default init
        blocks=[make_block_params(keys[4 + i], C, H) for i in range(layers)],
    )
    return params


# TODO(synk): LSTM dropout is a no-op (dropout=0, single layer) and is not modeled.

if __name__ == "__main__":
    B, N, L = 2, 16, 20                    # batch, input channels, frames
    C, H, K, layers, E = 16, 16, 8, 2, 8   # dprnn_output_channel, hidden, chunk, layers, spk_embed_dim

    key = jax.random.PRNGKey(0)
    kx, ks, kp = jax.random.split(key, 3)
    x = jax.random.normal(kx, (B, N, L), dtype=jnp.float32)
    spk_emb = jax.random.normal(ks, (B, E), dtype=jnp.float32)
    params = init_params(kp, N, C, H, E, layers)

    out = dual_path_rnn_forward(x, spk_emb, params, K)
    out = jax.block_until_ready(out)

    assert out.shape == (B, C, L), out.shape
    assert bool(jnp.all(jnp.isfinite(out)))
    print("KERNEL_OK")
</pallas_src>

<mosaic_0001>
module attributes {stable_mosaic.version = 11 : i64} {
  func.func @frontend_kernel(%arg0: i32, %arg1: memref<1x16x20xf32, #tpu.memory_space<vmem>>, %arg2: memref<16x1xf32, #tpu.memory_space<vmem>>, %arg3: memref<16x1xf32, #tpu.memory_space<vmem>>, %arg4: memref<16x16xf32, #tpu.memory_space<vmem>>, %arg5: memref<16x16xf32, #tpu.memory_space<vmem>>, %arg6: memref<16x8xf32, #tpu.memory_space<vmem>>, %arg7: memref<1x8x1xf32, #tpu.memory_space<vmem>>, %arg8: memref<1x16x20xf32, #tpu.memory_space<vmem>>) attributes {dimension_semantics = [#tpu.dimension_semantics<parallel>], iteration_bounds = array<i64: 2>, scalar_prefetch = 0 : i64, scratch_operands = 0 : i64, tpu.core_type = #tpu.core_type<tc>, window_params = [{transform_indices = @transform_0, window_bounds = array<i64: 1, 16, 20>}, {pipeline_mode = #tpu.pipeline_mode<synchronous>, transform_indices = @transform_1, window_bounds = array<i64: 16, 1>}, {pipeline_mode = #tpu.pipeline_mode<synchronous>, transform_indices = @transform_2, window_bounds = array<i64: 16, 1>}, {pipeline_mode = #tpu.pipeline_mode<synchronous>, transform_indices = @transform_3, window_bounds = array<i64: 16, 16>}, {pipeline_mode = #tpu.pipeline_mode<synchronous>, transform_indices = @transform_4, window_bounds = array<i64: 16, 16>}, {pipeline_mode = #tpu.pipeline_mode<synchronous>, transform_indices = @transform_5, window_bounds = array<i64: 16, 8>}, {transform_indices = @transform_6, window_bounds = array<i64: 1, 8, 1>}, {transform_indices = @transform_7, window_bounds = array<i64: 1, 16, 20>}]} {
    %c0 = arith.constant 0 : index
    %c0_0 = arith.constant 0 : index
    %c0_1 = arith.constant 0 : index
    %0 = vector.load %arg1[%c0, %c0_0, %c0_1] : memref<1x16x20xf32, #tpu.memory_space<vmem>>, vector<1x16x20xf32>
    %1 = vector.shape_cast %0 : vector<1x16x20xf32> to vector<16x20xf32>
    %2 = vector.shape_cast %1 : vector<16x20xf32> to vector<1x16x20xf32>
    %cst = arith.constant dense<0.000000e+00> : vector<1xf32>
    %3 = vector.multi_reduction <add>, %2, %cst [1, 2] : vector<1x16x20xf32> to vector<1xf32>
    %4 = vector.shape_cast %3 : vector<1xf32> to vector<1x1x1xf32>
    %5 = vector.extract %4[0, 0, 0] : f32 from vector<1x1x1xf32>
    %6 = arith.mulf %1, %1 : vector<16x20xf32>
    %7 = vector.shape_cast %6 : vector<16x20xf32> to vector<1x16x20xf32>
    %cst_2 = arith.constant dense<0.000000e+00> : vector<1xf32>
    %8 = vector.multi_reduction <add>, %7, %cst_2 [1, 2] : vector<1x16x20xf32> to vector<1xf32>
    %9 = vector.shape_cast %8 : vector<1xf32> to vector<1x1x1xf32>
    %10 = vector.extract %9[0, 0, 0] : f32 from vector<1x1x1xf32>
    %cst_3 = arith.constant 3.200000e+02 : f32
    %11 = arith.divf %5, %cst_3 : f32
    %cst_4 = arith.constant 3.200000e+02 : f32
    %12 = arith.divf %10, %cst_4 : f32
    %13 = arith.mulf %11, %11 : f32
    %14 = arith.subf %12, %13 : f32
    %cst_5 = arith.constant 0.000000e+00 : f32
    %15 = arith.maximumf %14, %cst_5 : f32
    %16 = vector.broadcast %11 : f32 to vector<16x20xf32>
    %17 = arith.subf %1, %16 : vector<16x20xf32>
    %cst_6 = arith.constant 9.99999993E-9 : f32
    %18 = arith.addf %15, %cst_6 : f32
    %19 = math.rsqrt %18 : f32
    %20 = vector.broadcast %19 : f32 to vector<16x20xf32>
    %21 = arith.mulf %17, %20 : vector<16x20xf32>
    %c0_7 = arith.constant 0 : index
    %c0_8 = arith.constant 0 : index
    %22 = vector.load %arg2[%c0_7, %c0_8] : memref<16x1xf32, #tpu.memory_space<vmem>>, vector<16x1xf32>
    %23 = vector.broadcast %22 : vector<16x1xf32> to vector<16x20xf32>
    %24 = arith.mulf %21, %23 : vector<16x20xf32>
    %c0_9 = arith.constant 0 : index
    %c0_10 = arith.constant 0 : index
    %25 = vector.load %arg3[%c0_9, %c0_10] : memref<16x1xf32, #tpu.memory_space<vmem>>, vector<16x1xf32>
    %26 = vector.broadcast %25 : vector<16x1xf32> to vector<16x20xf32>
    %27 = arith.addf %24, %26 : vector<16x20xf32>
    %c0_11 = arith.constant 0 : index
    %c0_12 = arith.constant 0 : index
    %28 = vector.load %arg4[%c0_11, %c0_12] : memref<16x16xf32, #tpu.memory_space<vmem>>, vector<16x16xf32>
    %cst_13 = arith.constant dense<0.000000e+00> : vector<16x20xf32>
    %29 = tpu.matmul %28, %27, %cst_13 {dimension_numbers = #tpu.dot_dimension_numbers<[1], [0], [0], [1], [0, 0, 1, 1], [], []>} : vector<16x16xf32>, vector<16x20xf32>, vector<16x20xf32> -> vector<16x20xf32>
    %c0_14 = arith.constant 0 : index
    %c0_15 = arith.constant 0 : index
    %30 = vector.load %arg6[%c0_14, %c0_15] : memref<16x8xf32, #tpu.memory_space<vmem>>, vector<16x8xf32>
    %c0_16 = arith.constant 0 : index
    %c0_17 = arith.constant 0 : index
    %c0_18 = arith.constant 0 : index
    %31 = vector.load %arg7[%c0_16, %c0_17, %c0_18] : memref<1x8x1xf32, #tpu.memory_space<vmem>>, vector<1x8x1xf32>
    %32 = vector.shape_cast %31 : vector<1x8x1xf32> to vector<8x1xf32>
    %cst_19 = arith.constant dense<0.000000e+00> : vector<16x1xf32>
    %33 = tpu.matmul %30, %32, %cst_19 {dimension_numbers = #tpu.dot_dimension_numbers<[1], [0], [0], [1], [0, 0, 1, 1], [], []>} : vector<16x8xf32>, vector<8x1xf32>, vector<16x1xf32> -> vector<16x1xf32>
    %c0_20 = arith.constant 0 : index
    %c0_21 = arith.constant 0 : index
    %34 = vector.load %arg5[%c0_20, %c0_21] : memref<16x16xf32, #tpu.memory_space<vmem>>, vector<16x16xf32>
    %cst_22 = arith.constant dense<0.000000e+00> : vector<16x20xf32>
    %35 = tpu.matmul %34, %29, %cst_22 {dimension_numbers = #tpu.dot_dimension_numbers<[1], [0], [0], [1], [0, 0, 1, 1], [], []>} : vector<16x16xf32>, vector<16x20xf32>, vector<16x20xf32> -> vector<16x20xf32>
    %36 = vector.broadcast %33 : vector<16x1xf32> to vector<16x20xf32>
    %37 = arith.addf %35, %36 : vector<16x20xf32>
    %c0_23 = arith.constant 0 : index
    %c0_24 = arith.constant 0 : index
    %c0_25 = arith.constant 0 : index
    %38 = vector.load %arg8[%c0_23, %c0_24, %c0_25] : memref<1x16x20xf32, #tpu.memory_space<vmem>>, vector<1x16x20xf32>
    %39 = vector.shape_cast %38 : vector<1x16x20xf32> to vector<16x20xf32>
    %40 = vector.shape_cast %37 : vector<16x20xf32> to vector<1x16x20xf32>
    tpu.vector_store %arg8[%c0_23, %c0_24, %c0_25], %40 {strides = array<i32>} : memref<1x16x20xf32, #tpu.memory_space<vmem>>, vector<1x16x20xf32>,
    return
  }
  func.func @transform_0(%arg0: i32) -> (i32, i32, i32) {
    %c0_i32 = arith.constant 0 : i32
    %c0_i32_0 = arith.constant 0 : i32
    %c0_i32_1 = arith.constant 0 : i32
    return %arg0, %c0_i32, %c0_i32_0 : i32, i32, i32
  }
  func.func @transform_1(%arg0: i32) -> (i32, i32) {
    %c0_i32 = arith.constant 0 : i32
    %c0_i32_0 = arith.constant 0 : i32
    %c0_i32_1 = arith.constant 0 : i32
    return %c0_i32, %c0_i32_0 : i32, i32
  }
  func.func @transform_2(%arg0: i32) -> (i32, i32) {
    %c0_i32 = arith.constant 0 : i32
    %c0_i32_0 = arith.constant 0 : i32
    %c0_i32_1 = arith.constant 0 : i32
    return %c0_i32, %c0_i32_0 : i32, i32
  }
  func.func @transform_3(%arg0: i32) -> (i32, i32) {
    %c0_i32 = arith.constant 0 : i32
    %c0_i32_0 = arith.constant 0 : i32
    %c0_i32_1 = arith.constant 0 : i32
    return %c0_i32, %c0_i32_0 : i32, i32
  }
  func.func @transform_4(%arg0: i32) -> (i32, i32) {
    %c0_i32 = arith.constant 0 : i32
    %c0_i32_0 = arith.constant 0 : i32
    %c0_i32_1 = arith.constant 0 : i32
    return %c0_i32, %c0_i32_0 : i32, i32
  }
  func.func @transform_5(%arg0: i32) -> (i32, i32) {
    %c0_i32 = arith.constant 0 : i32
    %c0_i32_0 = arith.constant 0 : i32
    %c0_i32_1 = arith.constant 0 : i32
    return %c0_i32, %c0_i32_0 : i32, i32
  }
  func.func @transform_6(%arg0: i32) -> (i32, i32, i32) {
    %c0_i32 = arith.constant 0 : i32
    %c0_i32_0 = arith.constant 0 : i32
    %c0_i32_1 = arith.constant 0 : i32
    return %arg0, %c0_i32, %c0_i32_0 : i32, i32, i32
  }
  func.func @transform_7(%arg0: i32) -> (i32, i32, i32) {
    %c0_i32 = arith.constant 0 : i32
    %c0_i32_0 = arith.constant 0 : i32
    %c0_i32_1 = arith.constant 0 : i32
    return %arg0, %c0_i32, %c0_i32_0 : i32, i32, i32
  }
}

</mosaic_0001>

<llo_original>
// kernel: tpu_custom_call.1
$region0: #{tpu_custom_call.1}
  #allocation0 [shape = 'u32[]', space=smem, size = 0x4, offset = 0x4, fixed_abs, tag = 'smem constant byte address 0x4 - core index']
  #allocation1 [shape = 'u32[144,128]{1,0:T(1,128)}', space=vmem, size = 0x12000, scoped, tag = 'internal scratch']
  %s0 = inlined_call_operand.vmem [shape: f32[2,16,20], index: 0, kind: input, shape index: {}]
  %s1 = inlined_call_operand.vmem [shape: f32[16,1], index: 1, kind: input, shape index: {}]
  %s2 = inlined_call_operand.vmem [shape: f32[16,1], index: 2, kind: input, shape index: {}]
  %s3 = inlined_call_operand.vmem [shape: f32[16,16], index: 3, kind: input, shape index: {}]
  %s4 = inlined_call_operand.vmem [shape: f32[16,16], index: 4, kind: input, shape index: {}]
  %s5 = inlined_call_operand.vmem [shape: f32[16,8], index: 5, kind: input, shape index: {}]
  %s6 = inlined_call_operand.vmem [shape: f32[2,8,1], index: 6, kind: input, shape index: {}]
  %s7 = inlined_call_operand.hbm [shape: f32[2,16,20], index: 7, kind: output, shape index: {}]
  %s8 = sld [smem:[#allocation0]]
  $region61: #{tpu_custom_call.1} parent=0
    _
  %s10 = ssub.s32 1, %s8
  %s11 = scalar_select 0, %s10, %s8
  $region1: #{tpu_custom_call.1} parent=0
    #allocation2 [shape = 'u8[16384]{0}', space=vmem, size = 0x4000, scoped, tag = 'output window, operand 0']
    #allocation3 [shape = 's32[2]{0}', space=sflag, size = 0x8, scoped, tag = 'scoped memory for tpu_custom_call.1']
    %12 = vsyncpa [#allocation3], 0
    %s13 = scalar_lea.sflag [#allocation3], 1
    %14 = vsyncpa %s13, 0
    loop: start=0, step=1, limit=4
    $region2: #{tpu_custom_call.1} parent=1 // loop_pre_header
      _
    $region3: #{tpu_custom_call.1} parent=1 // loop_header
      %s16 = sphi 0, %s20
      %p17 = scmp.ge.s32.totalorder %s16, 4
      %s26 = sphi 0, %s28
      %s29 = sphi 0, %s26
      %s30 = sphi 0, %s29
      %s46 = sphi 0, %s30
      %s50 = sphi 0, %s50
      %s52 = sphi 0, %s50
      %s53 = sphi 0, %s52
      %s67 = sphi 0, %s53
      %s71 = sphi 0, %s71
      %s73 = sphi 0, %s71
      %s74 = sphi 0, %s73
      %s88 = sphi 0, %s74
      %s92 = sphi 0, %s92
      %s94 = sphi 0, %s92
      %s95 = sphi 0, %s94
      %s109 = sphi 0, %s95
      %s113 = sphi 0, %s113
      %s115 = sphi 0, %s113
      %s116 = sphi 0, %s115
      %s130 = sphi 0, %s116
      %s134 = sphi 0, %s134
      %s136 = sphi 0, %s134
      %s137 = sphi 0, %s136
      %s151 = sphi 0, %s137
      %s157 = sphi 0, %s159
      %s160 = sphi 0, %s157
      %s161 = sphi 0, %s160
      %s177 = sphi 0, %s161
      %s183 = sphi 0, %s185
      %s186 = sphi 0, %s183
      %s187 = sphi 0, %s186
      %s203 = sphi 0, %s187
    $region4: #{tpu_custom_call.1} parent=1 // loop_header_branch
      %19 = sbr.rel (%p17) target = $region8
    $region5: #{tpu_custom_call.1} parent=1 // loop_body
      %s21 = ssub.s32 %s16, 1
      %s22 = ssub.s32 %s16, 2
      %s23 = sadd.s32 %s16, 1
      %s24 = ssub.s32 %s16, %s23
      %p25 = scmp.eq.s32.totalorder %s24, 0
      %s27 = sadd.s32 %s26, 1
      %s28 = scalar_select %p25, %s26, %s27
      %p31 = pneg %p25
      %p32 = scmp.eq.s32.totalorder %s16, 1
      %p33 = por %p31, %p32
      %p34 = scmp.ne.s32.totalorder %s26, %s29
      %p35 = scmp.eq.s32.totalorder %s16, 0
      %p36 = por %p34, %p35
      %p37 = scmp.ne.s32.totalorder %s26, %s29
      %p38 = scmp.eq.s32.totalorder %s21, 1
      %p39 = por %p37, %p38
      %p40 = scmp.ne.s32.totalorder %s29, %s30
      %p41 = scmp.eq.s32.totalorder %s21, 0
      %p42 = por %p40, %p41
      %p43 = scmp.ne.s32.totalorder %s29, %s30
      %p44 = scmp.eq.s32.totalorder %s22, 1
      %p45 = por %p43, %p44
      %p47 = scmp.ne.s32.totalorder %s30, %s46
      %p48 = scmp.eq.s32.totalorder %s22, 0
      %p49 = por %p47, %p48
      %s51 = sadd.s32 %s50, 1
      %p54 = scmp.eq.s32.totalorder %s16, 1
      %p55 = scmp.ne.s32.totalorder %s50, %s52
      %p56 = scmp.eq.s32.totalorder %s16, 0
      %p57 = por %p55, %p56
      %p58 = scmp.ne.s32.totalorder %s50, %s52
      %p59 = scmp.eq.s32.totalorder %s21, 1
      %p60 = por %p58, %p59
      %p61 = scmp.ne.s32.totalorder %s52, %s53
      %p62 = scmp.eq.s32.totalorder %s21, 0
      %p63 = por %p61, %p62
      %p64 = scmp.ne.s32.totalorder %s52, %s53
      %p65 = scmp.eq.s32.totalorder %s22, 1
      %p66 = por %p64, %p65
      %p68 = scmp.ne.s32.totalorder %s53, %s67
      %p69 = scmp.eq.s32.totalorder %s22, 0
      %p70 = por %p68, %p69
      %s72 = sadd.s32 %s71, 1
      %p75 = scmp.eq.s32.totalorder %s16, 1
      %p76 = scmp.ne.s32.totalorder %s71, %s73
      %p77 = scmp.eq.s32.totalorder %s16, 0
      %p78 = por %p76, %p77
      %p79 = scmp.ne.s32.totalorder %s71, %s73
      %p80 = scmp.eq.s32.totalorder %s21, 1
      %p81 = por %p79, %p80
      %p82 = scmp.ne.s32.totalorder %s73, %s74
      %p83 = scmp.eq.s32.totalorder %s21, 0
      %p84 = por %p82, %p83
      %p85 = scmp.ne.s32.totalorder %s73, %s74
      %p86 = scmp.eq.s32.totalorder %s22, 1
      %p87 = por %p85, %p86
      %p89 = scmp.ne.s32.totalorder %s74, %s88
      %p90 = scmp.eq.s32.totalorder %s22, 0
      %p91 = por %p89, %p90
      %s93 = sadd.s32 %s92, 1
      %p96 = scmp.eq.s32.totalorder %s16, 1
      %p97 = scmp.ne.s32.totalorder %s92, %s94
      %p98 = scmp.eq.s32.totalorder %s16, 0
      %p99 = por %p97, %p98
      %p100 = scmp.ne.s32.totalorder %s92, %s94
      %p101 = scmp.eq.s32.totalorder %s21, 1
      %p102 = por %p100, %p101
      %p103 = scmp.ne.s32.totalorder %s94, %s95
      %p104 = scmp.eq.s32.totalorder %s21, 0
      %p105 = por %p103, %p104
      %p106 = scmp.ne.s32.totalorder %s94, %s95
      %p107 = scmp.eq.s32.totalorder %s22, 1
      %p108 = por %p106, %p107
      %p110 = scmp.ne.s32.totalorder %s95, %s109
      %p111 = scmp.eq.s32.totalorder %s22, 0
      %p112 = por %p110, %p111
      %s114 = sadd.s32 %s113, 1
      %p117 = scmp.eq.s32.totalorder %s16, 1
      %p118 = scmp.ne.s32.totalorder %s113, %s115
      %p119 = scmp.eq.s32.totalorder %s16, 0
      %p120 = por %p118, %p119
      %p121 = scmp.ne.s32.totalorder %s113, %s115
      %p122 = scmp.eq.s32.totalorder %s21, 1
      %p123 = por %p121, %p122
      %p124 = scmp.ne.s32.totalorder %s115, %s116
      %p125 = scmp.eq.s32.totalorder %s21, 0
      %p126 = por %p124, %p125
      %p127 = scmp.ne.s32.totalorder %s115, %s116
      %p128 = scmp.eq.s32.totalorder %s22, 1
      %p129 = por %p127, %p128
      %p131 = scmp.ne.s32.totalorder %s116, %s130
      %p132 = scmp.eq.s32.totalorder %s22, 0
      %p133 = por %p131, %p132
      %s135 = sadd.s32 %s134, 1
      %p138 = scmp.eq.s32.totalorder %s16, 1
      %p139 = scmp.ne.s32.totalorder %s134, %s136
      %p140 = scmp.eq.s32.totalorder %s16, 0
      %p141 = por %p139, %p140
      %p142 = scmp.ne.s32.totalorder %s134, %s136
      %p143 = scmp.eq.s32.totalorder %s21, 1
      %p144 = por %p142, %p143
      %p145 = scmp.ne.s32.totalorder %s136, %s137
      %p146 = scmp.eq.s32.totalorder %s21, 0
      %p147 = por %p145, %p146
      %p148 = scmp.ne.s32.totalorder %s136, %s137
      %p149 = scmp.eq.s32.totalorder %s22, 1
      %p150 = por %p148, %p149
      %p152 = scmp.ne.s32.totalorder %s137, %s151
      %p153 = scmp.eq.s32.totalorder %s22, 0
      %p154 = por %p152, %p153
      %s155 = ssub.s32 %s16, %s23
      %p156 = scmp.eq.s32.totalorder %s155, 0
      %s158 = sadd.s32 %s157, 1
      %s159 = scalar_select %p156, %s157, %s158
      %p162 = pneg %p156
      %p163 = scmp.eq.s32.totalorder %s16, 1
      %p164 = por %p162, %p163
      %p165 = scmp.ne.s32.totalorder %s157, %s160
      %p166 = scmp.eq.s32.totalorder %s16, 0
      %p167 = por %p165, %p166
      %p168 = scmp.ne.s32.totalorder %s157, %s160
      %p169 = scmp.eq.s32.totalorder %s21, 1
      %p170 = por %p168, %p169
      %p171 = scmp.ne.s32.totalorder %s160, %s161
      %p172 = scmp.eq.s32.totalorder %s21, 0
      %p173 = por %p171, %p172
      %p174 = scmp.ne.s32.totalorder %s160, %s161
      %p175 = scmp.eq.s32.totalorder %s22, 1
      %p176 = por %p174, %p175
      %p178 = scmp.ne.s32.totalorder %s161, %s177
      %p179 = scmp.eq.s32.totalorder %s22, 0
      %p180 = por %p178, %p179
      %s181 = ssub.s32 %s16, %s23
      %p182 = scmp.eq.s32.totalorder %s181, 0
      %s184 = sadd.s32 %s183, 1
      %s185 = scalar_select %p182, %s183, %s184
      %p188 = pneg %p182
      %p189 = scmp.eq.s32.totalorder %s16, 1
      %p190 = por %p188, %p189
      %p191 = scmp.ne.s32.totalorder %s183, %s186
      %p192 = scmp.eq.s32.totalorder %s16, 0
      %p193 = por %p191, %p192
      %p194 = scmp.ne.s32.totalorder %s183, %s186
      %p195 = scmp.eq.s32.totalorder %s21, 1
      %p196 = por %p194, %p195
      %p197 = scmp.ne.s32.totalorder %s186, %s187
      %p198 = scmp.eq.s32.totalorder %s21, 0
      %p199 = por %p197, %p198
      %p200 = scmp.ne.s32.totalorder %s186, %s187
      %p201 = scmp.eq.s32.totalorder %s22, 1
      %p202 = por %p200, %p201
      %p204 = scmp.ne.s32.totalorder %s187, %s203
      %p205 = scmp.eq.s32.totalorder %s22, 0
      %p206 = por %p204, %p205
      %p207 = scmp.le.s32.totalorder 1, %s16
      %p208 = scmp.lt.s32.totalorder %s16, 3
      %p209 = pnand %p207, %p208
      %p210 = pneg %p209
      // Predicated region
      $region9: #{tpu_custom_call.1} parent=5 // pred_check
        _
      $region10: #{tpu_custom_call.1} parent=5 // pred_check_branch
        %212 = sbr.rel (%p209) target = $region12
      $region11: #{tpu_custom_call.1} parent=5 // pred_region
        %s213 = ssub.s32 %s16, 1
        // Predicated region
        $region13: #{tpu_custom_call.1} parent=11 // pred_check
          %p214 = pneg %p63
        $region14: #{tpu_custom_call.1} parent=11 // pred_check_branch
          %216 = sbr.rel (%p214) target = $region16
        $region15: #{tpu_custom_call.1} parent=11 // pred_region
          _
        $region16: #{tpu_custom_call.1} parent=11 // pred_fallthru
          _
        // Predicated region
        $region17: #{tpu_custom_call.1} parent=11 // pred_check
          %p217 = pneg %p84
        $region18: #{tpu_custom_call.1} parent=11 // pred_check_branch
          %219 = sbr.rel (%p217) target = $region20
        $region19: #{tpu_custom_call.1} parent=11 // pred_region
          _
        $region20: #{tpu_custom_call.1} parent=11 // pred_fallthru
          _
        // Predicated region
        $region21: #{tpu_custom_call.1} parent=11 // pred_check
          %p220 = pneg %p105
        $region22: #{tpu_custom_call.1} parent=11 // pred_check_branch
          %222 = sbr.rel (%p220) target = $region24
        $region23: #{tpu_custom_call.1} parent=11 // pred_region
          _
        $region24: #{tpu_custom_call.1} parent=11 // pred_fallthru
          _
        // Predicated region
        $region25: #{tpu_custom_call.1} parent=11 // pred_check
          %p223 = pneg %p126
        $region26: #{tpu_custom_call.1} parent=11 // pred_check_branch
          %225 = sbr.rel (%p223) target = $region28
        $region27: #{tpu_custom_call.1} parent=11 // pred_region
          _
        $region28: #{tpu_custom_call.1} parent=11 // pred_fallthru
          _
        // Predicated region
        $region29: #{tpu_custom_call.1} parent=11 // pred_check
          %p226 = pneg %p147
        $region30: #{tpu_custom_call.1} parent=11 // pred_check_branch
          %228 = sbr.rel (%p226) target = $region32
        $region31: #{tpu_custom_call.1} parent=11 // pred_region
          _
        $region32: #{tpu_custom_call.1} parent=11 // pred_fallthru
          _
      $region12: #{tpu_custom_call.1} parent=5 // pred_fallthru
        _
      %p229 = scmp.lt.s32.totalorder %s16, 2
      // Predicated region
      $region33: #{tpu_custom_call.1} parent=5 // pred_check
        %p230 = pneg %p229
      $region34: #{tpu_custom_call.1} parent=5 // pred_check_branch
        %232 = sbr.rel (%p230) target = $region36
      $region35: #{tpu_custom_call.1} parent=5 // pred_region
        // Predicated region
        $region37: #{tpu_custom_call.1} parent=35 // pred_check
          %p233 = pneg %p36
        $region38: #{tpu_custom_call.1} parent=35 // pred_check_branch
          %235 = sbr.rel (%p233) target = $region40
        $region39: #{tpu_custom_call.1} parent=35 // pred_region
          %p236 = scmp.lt.s32.totalorder %s16, 1
          %s237 = scalar_select %p236, %s16, 1
          %s238 = smul.addr %s237, 2
          %s239 = smul.addr %s238, 8
          %s240 = scalar_lea.vmem %s0, %s239
        $region40: #{tpu_custom_call.1} parent=35 // pred_fallthru
          _
        // Predicated region
        $region41: #{tpu_custom_call.1} parent=35 // pred_check
          %p241 = pneg %p167
        $region42: #{tpu_custom_call.1} parent=35 // pred_check_branch
          %243 = sbr.rel (%p241) target = $region44
        $region43: #{tpu_custom_call.1} parent=35 // pred_region
          %p244 = scmp.lt.s32.totalorder %s16, 1
          %s245 = scalar_select %p244, %s16, 1
          %s246 = smul.addr %s245, 8
          %s247 = scalar_lea.vmem %s6, %s246
        $region44: #{tpu_custom_call.1} parent=35 // pred_fallthru
          _
      $region36: #{tpu_custom_call.1} parent=5 // pred_fallthru
        _
      %p248 = scmp.le.s32.totalorder 1, %s16
      %p249 = scmp.lt.s32.totalorder %s16, 3
      %p250 = pnand %p248, %p249
      %p251 = pneg %p250
      // Predicated region
      $region45: #{tpu_custom_call.1} parent=5 // pred_check
        _
      $region46: #{tpu_custom_call.1} parent=5 // pred_check_branch
        %253 = sbr.rel (%p250) target = $region48
      $region47: #{tpu_custom_call.1} parent=5 // pred_region
        %s254 = ssub.s32 %s16, 1
        %p255 = scmp.lt.s32.totalorder %s21, 1
        %s256 = scalar_select %p255, %s21, 1
        %s257 = smul.addr %s256, 2
        %s258 = smul.addr %s257, 8
        %s259 = scalar_lea.vmem %s0, %s258
        %p260 = pneg %p42
        %p261 = pneg %p39
        %p262 = pneg %p63
        %p263 = pneg %p60
        %p264 = pneg %p84
        %p265 = pneg %p81
        %p266 = pneg %p105
        %p267 = pneg %p102
        %p268 = pneg %p126
        %p269 = pneg %p123
        %p270 = pneg %p147
        %p271 = pneg %p144
        %p272 = scmp.lt.s32.totalorder %s21, 1
        %s273 = scalar_select %p272, %s21, 1
        %s274 = smul.addr %s273, 8
        %s275 = scalar_lea.vmem %s6, %s274
        %p276 = pneg %p173
        %p277 = pneg %p170
        %p278 = pneg %p199
        %p279 = pneg %p196
        %s280 = sand.u32 %s186, 1
        %s281 = scalar_lea.sflag [#allocation3], %s280
        %s282 = sand.u32 %s186, 1
        %s283 = smul.addr %s282, 16
        %s284 = scalar_lea.vmem [#allocation2], %s283
        %p285 = scmp.lt.s32.totalorder %s21, 1
        %s286 = scalar_select %p285, %s21, 1
        %s287 = smul.addr %s286, 2
        %s288 = smul.addr %s287, 8
        %s289 = scalar_lea.vmem %s0, %s288
        %p290 = scmp.lt.s32.totalorder %s21, 1
        %s291 = scalar_select %p290, %s21, 1
        %s292 = smul.addr %s291, 8
        %s293 = scalar_lea.vmem %s6, %s292
        %v294 = vld [vmem:[%s289] sm:$0xff]
        %v295 = vld [vmem:[%s289 + $0x8] sm:$0xff]
        %vm296 = vcmask 162816
        %v297 = vsel %vm296, %v294, 0.0
        %v298 = vsel %vm296, %v295, 0.0
        %v299 = vadd.f32 %v297, %v298
        %300 = vadd.xlane.f32.xlu0 %v299
        %v301 = vpop.xlane.xlu0 %300
        %v302 = vrot.slane %v301, 4
        %v303 = vadd.f32 %v301, %v302
        %v304 = vrot.slane %v303, 2
        %v305 = vadd.f32 %v303, %v304
        %v306 = vrot.slane %v305, 1
        %v307 = vadd.f32 %v305, %v306
        %s308 = vtos %v307
        %v309 = vmul.f32 %v294, %v294
        %v310 = vmul.f32 %v295, %v295
        %v311 = vsel %vm296, %v309, 0.0
        %v312 = vsel %vm296, %v310, 0.0
        %v313 = vadd.f32 %v311, %v312
        %314 = vadd.xlane.f32.xlu0 %v313
        %v315 = vpop.xlane.xlu0 %314
        %v316 = vrot.slane %v315, 4
        %v317 = vadd.f32 %v315, %v316
        %v318 = vrot.slane %v317, 2
        %v319 = vadd.f32 %v317, %v318
        %v320 = vrot.slane %v319, 1
        %v321 = vadd.f32 %v319, %v320
        %s322 = vtos %v321
        %v323 = vrcp.pop 320.0
        %s324 = vtos %v323
        %s325 = smul.f32 %s308, %s324
        %v326 = vrcp.pop 320.0
        %s327 = vtos %v326
        %s328 = smul.f32 %s322, %s327
        %s329 = smul.f32 %s325, %s325
        %s330 = ssub.f32 %s328, %s329
        %s331 = smax.f32 %s330, 0.0
        %v332 = vstv %s325
        %v333 = vsub.f32 %v294, %v332
        %v334 = vsub.f32 %v295, %v332
        %s335 = sadd.f32 %s331, 1e-08
        %v336 = vstv %s335
        %v337 = vrsqrt.pop %v336
        %s338 = vtos %v337
        %v339 = vstv %s338
        %v340 = vmul.f32 %v333, %v339
        %v341 = vmul.f32 %v334, %v339
        %v342 = vld [vmem:[%s1] sm:$0xff]
        %v343 = vld [vmem:[%s1 + $0x8] sm:$0xff]
        %345 = vset.pattern.permute.xlu0 0
        %346 = vperm.xlu0 %345, %v342
        %v347 = vpop.permute.xlu0 %346
        %350 = vset.pattern.permute.xlu0 0
        %351 = vperm.xlu0 %350, %v343
        %v352 = vpop.permute.xlu0 %351
        %v354 = vmul.f32 %v340, %v347
        %v355 = vmul.f32 %v341, %v352
        %v356 = vld [vmem:[%s2] sm:$0xff]
        %v357 = vld [vmem:[%s2 + $0x8] sm:$0xff]
        %359 = vset.pattern.permute.xlu0 0
        %360 = vperm.xlu0 %359, %v356
        %v361 = vpop.permute.xlu0 %360
        %364 = vset.pattern.permute.xlu0 0
        %365 = vperm.xlu0 %364, %v357
        %v366 = vpop.permute.xlu0 %365
        %v368 = vadd.f32 %v354, %v361
        %v369 = vadd.f32 %v355, %v366
        %v370 = vld [vmem:[%s3] sm:$0xff]
        %v371 = vld [vmem:[%s3 + $0x8] sm:$0xff]
        %vm372 = vcmask 130048
        %v374 = vsel %vm372, %v370, 0
        %v377 = vsel %vm372, %v371, 0
        %379 = vmatprep.subr.mxu0 0.0
        %380 = vmatpush1.msra.mxu0 %v368
        %381 = vmatprep.subr.mxu0 0.0
        %382 = vmatpush1.msra.mxu0 %v369
        %383 = vmatprep.subr.mxu0 0.0
        %384 = vmatpush1.msra.mxu0 0.0
        %385 = vmatprep.subr.mxu0 0.0
        %386 = vmatpush1.msra.mxu0 0.0
        %387 = vmatprep.subr.mxu0 0.0
        %388 = vmatpush1.msra.mxu0 0.0
        %389 = vmatprep.subr.mxu0 0.0
        %390 = vmatpush1.msra.mxu0 0.0
        %391 = vmatprep.subr.mxu0 0.0
        %392 = vmatpush1.msra.mxu0 0.0
        %393 = vmatprep.subr.mxu0 0.0
        %394 = vmatpush1.msra.mxu0 0.0
        %395 = vmatprep.subr.mxu0 0.0
        %396 = vmatpush1.msra.mxu0 0.0
        %397 = vmatprep.subr.mxu0 0.0
        %398 = vmatpush1.msra.mxu0 0.0
        %399 = vmatprep.subr.mxu0 0.0
        %400 = vmatpush1.msra.mxu0 0.0
        %401 = vmatprep.subr.mxu0 0.0
        %402 = vmatpush1.msra.mxu0 0.0
        %403 = vmatprep.subr.mxu0 0.0
        %404 = vmatpush1.msra.mxu0 0.0
        %405 = vmatprep.subr.mxu0 0.0
        %406 = vmatpush1.msra.mxu0 0.0
        %407 = vmatprep.subr.mxu0 0.0
        %408 = vmatpush1.msra.mxu0 0.0
        %409 = vmatprep.subr.mxu0 0.0
        %410 = vmatpush1.msra.mxu0 0.0
        %411 = vmatprep.subr.mxu0 0.0
        %412 = vmatpush1.msra.mxu0 0.0
        %413 = vmatprep.subr.mxu0 0.0
        %414 = vmatpush1.msra.mxu0 0.0
        %415 = vmatprep.subr.mxu0 0.0
        %416 = vmatpush1.msra.mxu0 0.0
        %417 = vmatprep.subr.mxu0 0.0
        %418 = vmatpush1.msra.mxu0 0.0
        %419 = vmatprep.subr.mxu0 0.0
        %420 = vmatpush1.msra.mxu0 0.0
        %421 = vmatprep.subr.mxu0 0.0
        %422 = vmatpush1.msra.mxu0 0.0
        %423 = vmatprep.subr.mxu0 0.0
        %424 = vmatpush1.msra.mxu0 0.0
        %425 = vmatprep.subr.mxu0 0.0
        %426 = vmatpush1.msra.mxu0 0.0
        %427 = vmatprep.subr.mxu0 0.0
        %428 = vmatpush1.msra.mxu0 0.0
        %429 = vmatprep.subr.mxu0 0.0
        %430 = vmatpush1.msra.mxu0 0.0
        %431 = vmatprep.subr.mxu0 0.0
        %432 = vmatpush1.msra.mxu0 0.0
        %433 = vmatprep.subr.mxu0 0.0
        %434 = vmatpush1.msra.mxu0 0.0
        %435 = vmatprep.subr.mxu0 0.0
        %436 = vmatpush1.msra.mxu0 0.0
        %437 = vmatprep.subr.mxu0 0.0
        %438 = vmatpush1.msra.mxu0 0.0
        %439 = vmatprep.subr.mxu0 0.0
        %440 = vmatpush1.msra.mxu0 0.0
        %441 = vmatprep.subr.mxu0 0.0
        %442 = vmatpush1.msra.mxu0 0.0
        %443 = vmatprep.mubr.f32.mxu0 0.0
        %444 = vmatmul.mubr.f32.gmra.mrb[0].mxu0 %v374
        %v445 = vpop.f32.mrb[0].mxu0
        %v446 = vadd.f32 0.0, %v445
        %v447 = vpop.f32.mrb[0].mxu0
        %448 = vmatprep.mubr.f32.mxu0 0.0
        %449 = vmatmul.mubr.f32.gmra.mrb[0].mxu0 %v377
        %v450 = vpop.f32.mrb[0].mxu0
        %v451 = vadd.f32 0.0, %v450
        %v452 = vpop.f32.mrb[0].mxu0
        %453 = vdwg.mxu0
        %v454 = vld [vmem:[%s5] sm:$0xff]
        %v455 = vld [vmem:[%s5 + $0x8] sm:$0xff]
        %v456 = vld [vmem:[%s293] sm:$0xff]
        %vm457 = vcmask 64512
        %v459 = vsel %vm457, %v454, 0
        %v462 = vsel %vm457, %v455, 0
        %464 = vmatprep.subr.mxu0 0.0
        %465 = vmatpush1.msra.mxu0 %v456
        %466 = vmatprep.subr.mxu0 0.0
        %467 = vmatpush1.msra.mxu0 0.0
        %468 = vmatprep.subr.mxu0 0.0
        %469 = vmatpush1.msra.mxu0 0.0
        %470 = vmatprep.subr.mxu0 0.0
        %471 = vmatpush1.msra.mxu0 0.0
        %472 = vmatprep.subr.mxu0 0.0
        %473 = vmatpush1.msra.mxu0 0.0
        %474 = vmatprep.subr.mxu0 0.0
        %475 = vmatpush1.msra.mxu0 0.0
        %476 = vmatprep.subr.mxu0 0.0
        %477 = vmatpush1.msra.mxu0 0.0
        %478 = vmatprep.subr.mxu0 0.0
        %479 = vmatpush1.msra.mxu0 0.0
        %480 = vmatprep.subr.mxu0 0.0
        %481 = vmatpush1.msra.mxu0 0.0
        %482 = vmatprep.subr.mxu0 0.0
        %483 = vmatpush1.msra.mxu0 0.0
        %484 = vmatprep.subr.mxu0 0.0
        %485 = vmatpush1.msra.mxu0 0.0
        %486 = vmatprep.subr.mxu0 0.0
        %487 = vmatpush1.msra.mxu0 0.0
        %488 = vmatprep.subr.mxu0 0.0
        %489 = vmatpush1.msra.mxu0 0.0
        %490 = vmatprep.subr.mxu0 0.0
        %491 = vmatpush1.msra.mxu0 0.0
        %492 = vmatprep.subr.mxu0 0.0
        %493 = vmatpush1.msra.mxu0 0.0
        %494 = vmatprep.subr.mxu0 0.0
        %495 = vmatpush1.msra.mxu0 0.0
        %496 = vmatprep.subr.mxu0 0.0
        %497 = vmatpush1.msra.mxu0 0.0
        %498 = vmatprep.subr.mxu0 0.0
        %499 = vmatpush1.msra.mxu0 0.0
        %500 = vmatprep.subr.mxu0 0.0
        %501 = vmatpush1.msra.mxu0 0.0
        %502 = vmatprep.subr.mxu0 0.0
        %503 = vmatpush1.msra.mxu0 0.0
        %504 = vmatprep.subr.mxu0 0.0
        %505 = vmatpush1.msra.mxu0 0.0
        %506 = vmatprep.subr.mxu0 0.0
        %507 = vmatpush1.msra.mxu0 0.0
        %508 = vmatprep.subr.mxu0 0.0
        %509 = vmatpush1.msra.mxu0 0.0
        %510 = vmatprep.subr.mxu0 0.0
        %511 = vmatpush1.msra.mxu0 0.0
        %512 = vmatprep.subr.mxu0 0.0
        %513 = vmatpush1.msra.mxu0 0.0
        %514 = vmatprep.subr.mxu0 0.0
        %515 = vmatpush1.msra.mxu0 0.0
        %516 = vmatprep.subr.mxu0 0.0
        %517 = vmatpush1.msra.mxu0 0.0
        %518 = vmatprep.subr.mxu0 0.0
        %519 = vmatpush1.msra.mxu0 0.0
        %520 = vmatprep.subr.mxu0 0.0
        %521 = vmatpush1.msra.mxu0 0.0
        %522 = vmatprep.subr.mxu0 0.0
        %523 = vmatpush1.msra.mxu0 0.0
        %524 = vmatprep.subr.mxu0 0.0
        %525 = vmatpush1.msra.mxu0 0.0
        %526 = vmatprep.subr.mxu0 0.0
        %527 = vmatpush1.msra.mxu0 0.0
        %528 = vmatprep.mubr.f32.mxu0 0.0
        %529 = vmatmul.mubr.f32.gmra.mrb[0].mxu0 %v459
        %v530 = vpop.f32.mrb[0].mxu0
        %v531 = vadd.f32 0.0, %v530
        %v532 = vpop.f32.mrb[0].mxu0
        %533 = vmatprep.mubr.f32.mxu0 0.0
        %534 = vmatmul.mubr.f32.gmra.mrb[0].mxu0 %v462
        %v535 = vpop.f32.mrb[0].mxu0
        %v536 = vadd.f32 0.0, %v535
        %v537 = vpop.f32.mrb[0].mxu0
        %538 = vdwg.mxu0
        %v539 = vld [vmem:[%s4] sm:$0xff]
        %v540 = vld [vmem:[%s4 + $0x8] sm:$0xff]
        %542 = vset.pattern.permute.xlu0 0
        %543 = vperm.xlu0 %542, %v531
        %v544 = vpop.permute.xlu0 %543
        %547 = vset.pattern.permute.xlu0 0
        %548 = vperm.xlu0 %547, %v536
        %v549 = vpop.permute.xlu0 %548
        %v552 = vsel %vm372, %v539, 0
        %v555 = vsel %vm372, %v540, 0
        %557 = vmatprep.subr.mxu0 0.0
        %558 = vmatpush1.msra.mxu0 %v446
        %559 = vmatprep.subr.mxu0 0.0
        %560 = vmatpush1.msra.mxu0 %v451
        %561 = vmatprep.subr.mxu0 0.0
        %562 = vmatpush1.msra.mxu0 0.0
        %563 = vmatprep.subr.mxu0 0.0
        %564 = vmatpush1.msra.mxu0 0.0
        %565 = vmatprep.subr.mxu0 0.0
        %566 = vmatpush1.msra.mxu0 0.0
        %567 = vmatprep.subr.mxu0 0.0
        %568 = vmatpush1.msra.mxu0 0.0
        %569 = vmatprep.subr.mxu0 0.0
        %570 = vmatpush1.msra.mxu0 0.0
        %571 = vmatprep.subr.mxu0 0.0
        %572 = vmatpush1.msra.mxu0 0.0
        %573 = vmatprep.subr.mxu0 0.0
        %574 = vmatpush1.msra.mxu0 0.0
        %575 = vmatprep.subr.mxu0 0.0
        %576 = vmatpush1.msra.mxu0 0.0
        %577 = vmatprep.subr.mxu0 0.0
        %578 = vmatpush1.msra.mxu0 0.0
        %579 = vmatprep.subr.mxu0 0.0
        %580 = vmatpush1.msra.mxu0 0.0
        %581 = vmatprep.subr.mxu0 0.0
        %582 = vmatpush1.msra.mxu0 0.0
        %583 = vmatprep.subr.mxu0 0.0
        %584 = vmatpush1.msra.mxu0 0.0
        %585 = vmatprep.subr.mxu0 0.0
        %586 = vmatpush1.msra.mxu0 0.0
        %587 = vmatprep.subr.mxu0 0.0
        %588 = vmatpush1.msra.mxu0 0.0
        %589 = vmatprep.subr.mxu0 0.0
        %590 = vmatpush1.msra.mxu0 0.0
        %591 = vmatprep.subr.mxu0 0.0
        %592 = vmatpush1.msra.mxu0 0.0
        %593 = vmatprep.subr.mxu0 0.0
        %594 = vmatpush1.msra.mxu0 0.0
        %595 = vmatprep.subr.mxu0 0.0
        %596 = vmatpush1.msra.mxu0 0.0
        %597 = vmatprep.subr.mxu0 0.0
        %598 = vmatpush1.msra.mxu0 0.0
        %599 = vmatprep.subr.mxu0 0.0
        %600 = vmatpush1.msra.mxu0 0.0
        %601 = vmatprep.subr.mxu0 0.0
        %602 = vmatpush1.msra.mxu0 0.0
        %603 = vmatprep.subr.mxu0 0.0
        %604 = vmatpush1.msra.mxu0 0.0
        %605 = vmatprep.subr.mxu0 0.0
        %606 = vmatpush1.msra.mxu0 0.0
        %607 = vmatprep.subr.mxu0 0.0
        %608 = vmatpush1.msra.mxu0 0.0
        %609 = vmatprep.subr.mxu0 0.0
        %610 = vmatpush1.msra.mxu0 0.0
        %611 = vmatprep.subr.mxu0 0.0
        %612 = vmatpush1.msra.mxu0 0.0
        %613 = vmatprep.subr.mxu0 0.0
        %614 = vmatpush1.msra.mxu0 0.0
        %615 = vmatprep.subr.mxu0 0.0
        %616 = vmatpush1.msra.mxu0 0.0
        %617 = vmatprep.subr.mxu0 0.0
        %618 = vmatpush1.msra.mxu0 0.0
        %619 = vmatprep.subr.mxu0 0.0
        %620 = vmatpush1.msra.mxu0 0.0
        %621 = vmatprep.mubr.f32.mxu0 0.0
        %622 = vmatmul.mubr.f32.gmra.mrb[0].mxu0 %v552
        %v623 = vpop.f32.mrb[0].mxu0
        %v624 = vadd.f32 %v544, %v623
        %v625 = vpop.f32.mrb[0].mxu0
        %626 = vmatprep.mubr.f32.mxu0 0.0
        %627 = vmatmul.mubr.f32.gmra.mrb[0].mxu0 %v555
        %v628 = vpop.f32.mrb[0].mxu0
        %v629 = vadd.f32 %v549, %v628
        %v630 = vpop.f32.mrb[0].mxu0
        %631 = vdwg.mxu0
        %632 = vst.msk [vmem:[%s284] sm:$0xff] %vm296, %v624
        %633 = vst.msk [vmem:[%s284 + $0x8] sm:$0xff] %vm296, %v629
        %s634 = sand.u32 %s186, 1
        %s635 = scalar_lea.sflag [#allocation3], %s634
        %s636 = sand.u32 %s186, 1
        %s637 = smul.addr %s636, 16
        %s638 = scalar_lea.vmem [#allocation2], %s637
        // Predicated region
        $region49: #{tpu_custom_call.1} parent=47 // pred_check
          %p639 = pneg %p196
        $region50: #{tpu_custom_call.1} parent=47 // pred_check_branch
          %641 = sbr.rel (%p639) target = $region52
        $region51: #{tpu_custom_call.1} parent=47 // pred_region
          %s643 = ssub.s32 256, 256
          %644 = vsyncadd %s635, %s643
          %s645 = smul.addr %s21, 2
          %s646 = smul.addr %s645, 128
          %s647 = scalar_lea.hbm %s7, %s646
          %s648 = sshll.u32 %s638, 4
          %s649 = int_to_ptr.vmem [resolvable:$true] %s648
          %654 = dma.vmem_to_hbm [thread:$0]  %s649, 256, %s647, %s635, 128, 128, 8
        $region52: #{tpu_custom_call.1} parent=47 // pred_fallthru
          _
      $region48: #{tpu_custom_call.1} parent=5 // pred_fallthru
        _
      %p655 = scmp.le.s32.totalorder 2, %s16
      // Predicated region
      $region53: #{tpu_custom_call.1} parent=5 // pred_check
        %p656 = pneg %p655
      $region54: #{tpu_custom_call.1} parent=5 // pred_check_branch
        %658 = sbr.rel (%p656) target = $region56
      $region55: #{tpu_custom_call.1} parent=5 // pred_region
        %s659 = ssub.s32 %s16, 2
        // Predicated region
        $region57: #{tpu_custom_call.1} parent=55 // pred_check
          %p660 = pneg %p202
        $region58: #{tpu_custom_call.1} parent=55 // pred_check_branch
          %662 = sbr.rel (%p660) target = $region60
        $region59: #{tpu_custom_call.1} parent=55 // pred_region
          %s663 = sand.u32 %s187, 1
          %s664 = scalar_lea.sflag [#allocation3], %s663
          %s665 = sand.u32 %s187, 1
          %s666 = smul.addr %s665, 16
          %s667 = scalar_lea.vmem [#allocation2], %s666
          %668 = dma.done %s664, 256
        $region60: #{tpu_custom_call.1} parent=55 // pred_fallthru
          _
      $region56: #{tpu_custom_call.1} parent=5 // pred_fallthru
        _
    $region6: #{tpu_custom_call.1} parent=1 // loop_footer
      %s20 = sadd.s32 1, %s16
    $region7: #{tpu_custom_call.1} parent=1 // loop_footer_branch
      %15 = sbr.rel target = $region3
    $region8: #{tpu_custom_call.1} parent=1 // loop_exit
      _
    %669 = vsyncpa [#allocation3], 1
    %s670 = scalar_lea.sflag [#allocation3], 1
    %671 = vsyncpa %s670, 1

</llo_original>
